<compile_context>
chip_gen: v7x
topology: tpu7x:2x2x1
jax: 0.10.0
libtpu: 0.0.40
codegen_flags: <defaults>
</compile_context>

<pallas_src>
import math

import jax
import jax.numpy as jnp
from jax.experimental import pallas as pl
from jax.experimental.pallas import tpu as pltpu

# Dict keys matching the PyTorch module's defaults (KEY.* constants).
KEY_NODE_FEATURE = "node_feature"
KEY_ATOM_TYPE = "atom_type"
KEY_NODE_ATTR = "node_attr"

_OUT_BLOCK_BYTES = 2 << 20       # target output block (~2 MiB amortizes step overhead)
_EXPAND_BYTES_LIMIT = 8 << 20    # resident bf16 expansion-matrix cap (one-time VMEM cost)
_VMEM_BUDGET = 24 << 20          # in-flight VMEM target used for tile sizing
_VMEM_LIMIT = 32 << 20           # explicit scoped-VMEM limit (safe on v5e/v6e/v7x)


def _round_down8(x: int) -> int:
    return max(8, (x // 8) * 8)


def _pick_row_tile(rows: int, row_block_bytes: int, row_extra_bytes: int,
                   resident_bytes: int) -> int:
    """Row tile (multiple of 8, or full extent) for the output block."""
    cap_block = max(1, _OUT_BLOCK_BYTES // max(row_block_bytes, 1))
    # ~2x out block (double buffer) + ~2x block-sized temporaries + inputs.
    per_row = 4 * row_block_bytes + row_extra_bytes
    budget = max(_VMEM_BUDGET - resident_bytes, 1 << 20)
    cap_vmem = max(1, budget // max(per_row, 1))
    tile = min(cap_block, cap_vmem, rows)
    # v7x megacore: keep >=2 grid steps along the row axis when rows permit
    # (no effect on single-TensorCore v5e/v6e).
    if rows >= 16:
        tile = min(tile, _round_down8(rows // 2))
    if tile < rows:
        tile = _round_down8(tile)
    return tile


def _onehot_packed_kernel(idx_ref, expand_ref, cls_ref, out_ref):
    """Lane-dense packed one-hot.

    idx_ref:    (T, pack) int32           -- pack consecutive node indices / row
    expand_ref: (pack, pack*C) bfloat16   -- 0/1 expansion matrix, VMEM-resident
    cls_ref:    (1, pack*C) float32       -- class id per lane, VMEM-resident
    out_ref:    (T, pack*C) float32       -- row-major packed one-hot
    """
    idx_bf = idx_ref[...].astype(jnp.bfloat16)          # exact: idx < C <= 256
    # expanded[t, j] == idx[t, j // C]  (each index repeated C times along lanes)
    expanded = jnp.dot(idx_bf, expand_ref[...],
                       preferred_element_type=jnp.float32)
    out_ref[...] = (expanded == cls_ref[...]).astype(out_ref.dtype)


def _onehot_plain_kernel(idx_ref, out_ref):
    """Fallback (C > 256): idx_ref (T, 1) int32; out_ref (T, tile_c) float32."""
    base = pl.program_id(1) * out_ref.shape[-1]
    cls = base + jax.lax.broadcasted_iota(jnp.int32, out_ref.shape, 1)
    out_ref[...] = (idx_ref[...] == cls).astype(out_ref.dtype)


def _onehot_flat(indices: jax.Array, num_classes: int) -> jax.Array:
    """indices: (N,) int -> (N, num_classes) float32 one-hot."""
    n = int(indices.shape[0])
    c = int(num_classes)
    idx = indices.astype(jnp.int32)

    # Minimal pack so packed rows are a multiple of 128 f32 lanes; bump to >=8
    # so the index block uses several lanes (covers C that is a multiple of 128).
    pack_min = 128 // math.gcd(c, 128)
    pack = max(pack_min, 8)
    width = pack * c
    expand_bytes = pack * width * 2                      # bf16
    use_packed = (c <= 256) and (expand_bytes <= _EXPAND_BYTES_LIMIT)

    if use_packed:
        n_pad = pl.cdiv(n, pack) * pack
        if n_pad != n:
            idx = jnp.pad(idx, (0, n_pad - n))           # pad rows sliced off below
        rows = n_pad // pack
        idx2 = idx.reshape(rows, pack)                   # lane-dense index layout

        # Hoisted constants: built once here (constant-folded by XLA), DMA'd
        # once into VMEM via constant-block-index specs, resident for all steps.
        lane = jnp.arange(width, dtype=jnp.int32)[None, :]
        expand = (lane // c == jnp.arange(pack, dtype=jnp.int32)[:, None]
                  ).astype(jnp.bfloat16)                 # (pack, width) 0/1
        cls = (lane % c).astype(jnp.float32)             # (1, width)

        row_out_bytes = width * 4
        row_extra = 2 * 128 * 4                          # lane-padded idx block, x2 bufs
        resident = 2 * (expand_bytes + width * 4)        # conservative (2 buffers)
        tile = _pick_row_tile(rows, row_out_bytes, row_extra, resident)
        grid = (pl.cdiv(rows, tile),)

        out = pl.pallas_call(
            _onehot_packed_kernel,
            out_shape=jax.ShapeDtypeStruct((rows, width), jnp.float32),
            grid_spec=pltpu.PrefetchScalarGridSpec(
                num_scalar_prefetch=0,
                grid=grid,
                in_specs=[
                    pl.BlockSpec((tile, pack), lambda i: (i, 0)),
                    pl.BlockSpec((pack, width), lambda i: (0, 0)),   # resident
                    pl.BlockSpec((1, width), lambda i: (0, 0)),      # resident
                ],
                out_specs=pl.BlockSpec((tile, width), lambda i: (i, 0)),
            ),
            compiler_params=pltpu.CompilerParams(
                dimension_semantics=("parallel",),
                vmem_limit_bytes=_VMEM_LIMIT),
            cost_estimate=pl.CostEstimate(
                flops=2 * rows * pack * width,
                transcendentals=0,
                bytes_accessed=rows * pack * 4 + rows * width * 4 + expand_bytes),
        )(idx2, expand, cls)
        out = out.reshape(n_pad, c)                      # free: row-major reinterpretation
        if n_pad != n:
            out = out[:n]                                # normally fuses into the consumer
        return out

    # Unpacked fallback (C > 256).  Tile the class axis when C is a multiple of
    # 128 so the row tile (and the lane-padded (tile, 1) index block) stays
    # small and the index block is reused across class tiles.
    idx2 = idx.reshape(n, 1)
    tile_c = min(c, 512) if c % 128 == 0 else c
    row_out_bytes = tile_c * 4
    row_extra = 2 * 128 * 4
    tile_r = _pick_row_tile(n, row_out_bytes, row_extra, 0)
    grid = (pl.cdiv(n, tile_r), pl.cdiv(c, tile_c))

    return pl.pallas_call(
        _onehot_plain_kernel,
        out_shape=jax.ShapeDtypeStruct((n, c), jnp.float32),
        grid_spec=pltpu.PrefetchScalarGridSpec(
            num_scalar_prefetch=0,
            grid=grid,
            in_specs=[pl.BlockSpec((tile_r, 1), lambda i, j: (i, 0))],
            out_specs=pl.BlockSpec((tile_r, tile_c), lambda i, j: (i, j)),
        ),
        compiler_params=pltpu.CompilerParams(
            dimension_semantics=("parallel", "parallel"),
            vmem_limit_bytes=_VMEM_LIMIT),
        cost_estimate=pl.CostEstimate(
            flops=0,
            transcendentals=0,
            bytes_accessed=n * 4 * max(1, c // tile_c) + n * c * 4),
    )(idx2)


def onehot_embedding_pallas(indices: jax.Array, num_classes: int) -> jax.Array:
    """General entry: int indices of any shape -> float32 one-hot, shape + (C,)."""
    orig_shape = indices.shape
    flat = indices.reshape(-1)
    out = _onehot_flat(flat, num_classes)
    return out.reshape(*orig_shape, num_classes)


class OnehotEmbedding:
    """JAX/Pallas port of HIENet's OnehotEmbedding module."""

    def __init__(self, num_classes: int,
                 data_key_x: str = KEY_NODE_FEATURE,
                 data_key_save: str = KEY_ATOM_TYPE,
                 data_key_additional: str = KEY_NODE_ATTR):
        self.num_classes = num_classes
        self.key_x = data_key_x
        self.key_save = data_key_save
        self.key_additional_output = data_key_additional

    def __call__(self, data: dict) -> dict:
        inp = data[self.key_x]                                  # (N,) integer atom types
        embd = onehot_embedding_pallas(inp, self.num_classes)   # (N, C) float32
        data[self.key_x] = embd
        if self.key_additional_output is not None:
            data[self.key_additional_output] = embd
        if self.key_save is not None:
            data[self.key_save] = inp
        return data


if __name__ == "__main__":
    key = jax.random.PRNGKey(0)

    # Primary check: module forward, (N,) -> (N, num_classes).
    N, NUM_CLASSES = 16, 4
    atom_types = jax.random.randint(key, (N,), 0, NUM_CLASSES, dtype=jnp.int32)

    module = OnehotEmbedding(num_classes=NUM_CLASSES)
    data = {KEY_NODE_FEATURE: atom_types}
    data = module(data)
    embd = jax.block_until_ready(data[KEY_NODE_FEATURE])

    ref = jax.nn.one_hot(atom_types, NUM_CLASSES, dtype=jnp.float32)
    assert embd.shape == (N, NUM_CLASSES)
    assert embd.dtype == jnp.float32
    assert bool(jnp.all(embd == ref))
    assert data[KEY_NODE_ATTR] is embd
    assert bool(jnp.all(data[KEY_ATOM_TYPE] == atom_types))

    # Extra coverage:
    #   (300, 5)   packed path, odd C (pack=128)
    #   (40, 128)  packed path, C already a multiple of 128 (pack=8)
    #   (24, 384)  unpacked fallback, class-axis-tiled
    for n2, c2 in ((300, 5), (40, 128), (24, 384)):
        k2 = jax.random.fold_in(key, n2 * 1000 + c2)
        idx2 = jax.random.randint(k2, (n2,), 0, c2, dtype=jnp.int32)
        got = jax.block_until_ready(onehot_embedding_pallas(idx2, c2))
        want = jax.nn.one_hot(idx2, c2, dtype=jnp.float32)
        assert got.shape == (n2, c2)
        assert bool(jnp.all(got == want))

    print("KERNEL_OK")
</pallas_src>

<mosaic_0001>
module attributes {stable_mosaic.version = 11 : i64} {
  func.func @_onehot_packed_kernel(%arg0: i32, %arg1: memref<1x32xi32, #tpu.memory_space<vmem>>, %arg2: memref<32x128xbf16, #tpu.memory_space<vmem>>, %arg3: memref<1x128xf32, #tpu.memory_space<vmem>>, %arg4: memref<1x128xf32, #tpu.memory_space<vmem>>) attributes {dimension_semantics = [#tpu.dimension_semantics<parallel>], iteration_bounds = array<i64: 1>, scalar_prefetch = 0 : i64, scratch_operands = 0 : i64, tpu.core_type = #tpu.core_type<tc>, window_params = [{transform_indices = @transform_0, window_bounds = array<i64: 1, 32>}, {pipeline_mode = #tpu.pipeline_mode<synchronous>, transform_indices = @transform_1, window_bounds = array<i64: 32, 128>}, {pipeline_mode = #tpu.pipeline_mode<synchronous>, transform_indices = @transform_2, window_bounds = array<i64: 1, 128>}, {transform_indices = @transform_3, window_bounds = array<i64: 1, 128>}]} {
    %c0 = arith.constant 0 : index
    %c0_0 = arith.constant 0 : index
    %0 = vector.load %arg1[%c0, %c0_0] : memref<1x32xi32, #tpu.memory_space<vmem>>, vector<1x32xi32>
    %1 = arith.sitofp %0 : vector<1x32xi32> to vector<1x32xbf16>
    %c0_1 = arith.constant 0 : index
    %c0_2 = arith.constant 0 : index
    %2 = vector.load %arg2[%c0_1, %c0_2] : memref<32x128xbf16, #tpu.memory_space<vmem>>, vector<32x128xbf16>
    %cst = arith.constant dense<0.000000e+00> : vector<1x128xf32>
    %3 = tpu.matmul %1, %2, %cst {dimension_numbers = #tpu.dot_dimension_numbers<[1], [0], [0], [1], [0, 0, 1, 1], [], []>} : vector<1x32xbf16>, vector<32x128xbf16>, vector<1x128xf32> -> vector<1x128xf32>
    %c0_3 = arith.constant 0 : index
    %c0_4 = arith.constant 0 : index
    %4 = vector.load %arg3[%c0_3, %c0_4] : memref<1x128xf32, #tpu.memory_space<vmem>>, vector<1x128xf32>
    %5 = arith.cmpf oeq, %3, %4 : vector<1x128xf32>
    %6 = arith.extui %5 : vector<1x128xi1> to vector<1x128xi32>
    %7 = arith.sitofp %6 : vector<1x128xi32> to vector<1x128xf32>
    %c0_5 = arith.constant 0 : index
    %c0_6 = arith.constant 0 : index
    %8 = vector.load %arg4[%c0_5, %c0_6] : memref<1x128xf32, #tpu.memory_space<vmem>>, vector<1x128xf32>
    tpu.vector_store %arg4[%c0_5, %c0_6], %7 {strides = array<i32>} : memref<1x128xf32, #tpu.memory_space<vmem>>, vector<1x128xf32>,
    return
  }
  func.func @transform_0(%arg0: i32) -> (i32, i32) {
    %c0_i32 = arith.constant 0 : i32
    %c0_i32_0 = arith.constant 0 : i32
    return %arg0, %c0_i32 : i32, i32
  }
  func.func @transform_1(%arg0: i32) -> (i32, i32) {
    %c0_i32 = arith.constant 0 : i32
    %c0_i32_0 = arith.constant 0 : i32
    %c0_i32_1 = arith.constant 0 : i32
    return %c0_i32, %c0_i32_0 : i32, i32
  }
  func.func @transform_2(%arg0: i32) -> (i32, i32) {
    %c0_i32 = arith.constant 0 : i32
    %c0_i32_0 = arith.constant 0 : i32
    %c0_i32_1 = arith.constant 0 : i32
    return %c0_i32, %c0_i32_0 : i32, i32
  }
  func.func @transform_3(%arg0: i32) -> (i32, i32) {
    %c0_i32 = arith.constant 0 : i32
    %c0_i32_0 = arith.constant 0 : i32
    return %arg0, %c0_i32 : i32, i32
  }
}

</mosaic_0001>

<llo_original>
// kernel: tpu_custom_call.1
$region0: #{tpu_custom_call.1}
  #allocation0 [shape = 'u32[]', space=smem, size = 0x4, offset = 0x4, fixed_abs, tag = 'smem constant byte address 0x4 - core index']
  #allocation1 [shape = 'u32[144,128]{1,0:T(1,128)}', space=vmem, size = 0x12000, scoped, tag = 'internal scratch']
  %s0 = inlined_call_operand.hbm [shape: s32[1,32], index: 0, kind: input, shape index: {}]
  %s1 = inlined_call_operand.hbm [shape: bf16[32,128], index: 1, kind: input, shape index: {}]
  %s2 = inlined_call_operand.vmem [shape: f32[1,128], index: 2, kind: input, shape index: {}]
  %s3 = inlined_call_operand.hbm [shape: f32[1,128], index: 3, kind: output, shape index: {}]
  %s4 = sld [smem:[#allocation0]]
  $region30: #{tpu_custom_call.1} parent=0
    _
  %s6 = ssub.s32 1, %s4
  %s7 = scalar_select 0, %s6, %s4
  $region1: #{tpu_custom_call.1} parent=0
    #allocation2 [shape = 'u8[512]{0}', space=vmem, size = 0x400, scoped, tag = 'input window, operand 0, single buffered']
    #allocation3 [shape = 's32[1]{0}', space=sflag, size = 0x4, scoped, tag = 'scoped memory for tpu_custom_call.1']
    #allocation4 [shape = 's32[1]{0}', space=sflag, size = 0x4, scoped, tag = 'scoped memory for tpu_custom_call.1']
    #allocation5 [shape = 'u8[8192]{0}', space=vmem, size = 0x2000, scoped, tag = 'input window, operand 1, single buffered']
    #allocation6 [shape = 's32[1]{0}', space=sflag, size = 0x4, scoped, tag = 'scoped memory for tpu_custom_call.1']
    #allocation7 [shape = 'u8[512]{0}', space=vmem, size = 0x400, scoped, tag = 'output window, operand 0, single buffered']
    %8 = vsyncpa [#allocation3], 0
    %9 = vsyncpa [#allocation6], 0
    %10 = vsyncpa [#allocation4], 0
    // Predicated region
    $region2: #{tpu_custom_call.1} parent=1 // pred_check
      _
    $region3: #{tpu_custom_call.1} parent=1 // pred_check_branch
      %12 = sbr.rel (0) target = $region5
    $region4: #{tpu_custom_call.1} parent=1 // pred_region
      %s14 = ssub.s32 16, 16
      %15 = vsyncadd [#allocation3], %s14
      %s17 = sshll.u32 [#allocation2], 4
      %s18 = int_to_ptr.vmem [resolvable:$true] %s17
      %20 = dma.hbm_to_vmem [thread:$0]  %s0, 16, %s18, [#allocation3]
    $region5: #{tpu_custom_call.1} parent=1 // pred_fallthru
      _
    // Predicated region
    $region6: #{tpu_custom_call.1} parent=1 // pred_check
      _
    $region7: #{tpu_custom_call.1} parent=1 // pred_check_branch
      %22 = sbr.rel (0) target = $region9
    $region8: #{tpu_custom_call.1} parent=1 // pred_region
      %s24 = ssub.s32 256, 256
      %25 = vsyncadd [#allocation6], %s24
      %s26 = sshll.u32 [#allocation5], 4
      %s27 = int_to_ptr.vmem [resolvable:$true] %s26
      %32 = dma.hbm_to_vmem [thread:$0]  %s1, 256, %s27, [#allocation6], 64, 64, 4
    $region9: #{tpu_custom_call.1} parent=1 // pred_fallthru
      _
    // Predicated region
    $region10: #{tpu_custom_call.1} parent=1 // pred_check
      _
    $region11: #{tpu_custom_call.1} parent=1 // pred_check_branch
      %34 = sbr.rel (0) target = $region13
    $region12: #{tpu_custom_call.1} parent=1 // pred_region
      _
    $region13: #{tpu_custom_call.1} parent=1 // pred_fallthru
      _
    // Predicated region
    $region14: #{tpu_custom_call.1} parent=1 // pred_check
      _
    $region15: #{tpu_custom_call.1} parent=1 // pred_check_branch
      %36 = sbr.rel (0) target = $region17
    $region16: #{tpu_custom_call.1} parent=1 // pred_region
      %37 = dma.done [#allocation3], 16
    $region17: #{tpu_custom_call.1} parent=1 // pred_fallthru
      _
    // Predicated region
    $region18: #{tpu_custom_call.1} parent=1 // pred_check
      _
    $region19: #{tpu_custom_call.1} parent=1 // pred_check_branch
      %39 = sbr.rel (0) target = $region21
    $region20: #{tpu_custom_call.1} parent=1 // pred_region
      %40 = dma.done [#allocation6], 256
    $region21: #{tpu_custom_call.1} parent=1 // pred_fallthru
      _
    %v42 = vld [vmem:[#allocation2] sm:$0x1]
    %v43 = vcvt.s32.f32 %v42
    %v44 = vpack.c.bf16 %v43, %v43
    %v45 = vld [vmem:[#allocation5] sm:$0xf]
    %v46 = vld [vmem:[#allocation5 + $0x4] sm:$0xf]
    %v47 = vld [vmem:[#allocation5 + $0x8] sm:$0xf]
    %v48 = vld [vmem:[#allocation5 + $0xc] sm:$0xf]
    %v53 = vunpack.c.l.b16 %v45
    %v54 = vunpack.c.l.b16 %v46
    %v55 = vunpack.c.l.b16 %v47
    %v56 = vunpack.c.l.b16 %v48
    %v57 = vpack.c.b16 %v54, %v53
    %v58 = vpack.c.b16 %v56, %v55
    %vm61 = vcmask 261120
    %v63 = vsel %vm61, %v44, 0
    %65 = vmatprep.subr.bf16.mxu0 0
    %66 = vmatpush1.bf16.msra.mxu0 %v57
    %67 = vmatprep.subr.bf16.mxu0 0
    %68 = vmatpush1.bf16.msra.mxu0 %v58
    %69 = vmatprep.subr.bf16.mxu0 0
    %70 = vmatpush1.bf16.msra.mxu0 0
    %71 = vmatprep.subr.bf16.mxu0 0
    %72 = vmatpush1.bf16.msra.mxu0 0
    %73 = vmatprep.subr.bf16.mxu0 0
    %74 = vmatpush1.bf16.msra.mxu0 0
    %75 = vmatprep.subr.bf16.mxu0 0
    %76 = vmatpush1.bf16.msra.mxu0 0
    %77 = vmatprep.subr.bf16.mxu0 0
    %78 = vmatpush1.bf16.msra.mxu0 0
    %79 = vmatprep.subr.bf16.mxu0 0
    %80 = vmatpush1.bf16.msra.mxu0 0
    %81 = vmatprep.subr.bf16.mxu0 0
    %82 = vmatpush1.bf16.msra.mxu0 0
    %83 = vmatprep.subr.bf16.mxu0 0
    %84 = vmatpush1.bf16.msra.mxu0 0
    %85 = vmatprep.subr.bf16.mxu0 0
    %86 = vmatpush1.bf16.msra.mxu0 0
    %87 = vmatprep.subr.bf16.mxu0 0
    %88 = vmatpush1.bf16.msra.mxu0 0
    %89 = vmatprep.subr.bf16.mxu0 0
    %90 = vmatpush1.bf16.msra.mxu0 0
    %91 = vmatprep.subr.bf16.mxu0 0
    %92 = vmatpush1.bf16.msra.mxu0 0
    %93 = vmatprep.subr.bf16.mxu0 0
    %94 = vmatpush1.bf16.msra.mxu0 0
    %95 = vmatprep.subr.bf16.mxu0 0
    %96 = vmatpush1.bf16.msra.mxu0 0
    %97 = vmatprep.mubr.bf16.mxu0 0
    %98 = vmatmul.mubr.bf16.gmra.mrb[0].mxu0 %v63
    %v99 = vpop.f32.mrb[0].mxu0
    %v100 = vadd.f32 0.0, %v99
    %v101 = vpop.f32.mrb[0].mxu0
    %v102 = vpop.f32.mrb[0].mxu0
    %v103 = vpop.f32.mrb[0].mxu0
    %104 = vdwg.mxu0
    %v105 = vld [vmem:[%s2] sm:$0x1]
    %vm106 = vcmp.eq.f32.partialorder %v100, %v105
    %v107 = vsel %vm106, 1, 0
    %v108 = vcvt.s32.f32 %v107
    %109 = vst [vmem:[#allocation7] sm:$0x1] %v108
    // Predicated region
    $region22: #{tpu_custom_call.1} parent=1 // pred_check
      _
    $region23: #{tpu_custom_call.1} parent=1 // pred_check_branch
      %111 = sbr.rel (0) target = $region25
    $region24: #{tpu_custom_call.1} parent=1 // pred_region
      %s113 = ssub.s32 16, 16
      %114 = vsyncadd [#allocation4], %s113
      %s116 = sshll.u32 [#allocation7], 4
      %s117 = int_to_ptr.vmem [resolvable:$true] %s116
      %119 = dma.vmem_to_hbm [thread:$0]  %s117, 16, %s3, [#allocation4]
    $region25: #{tpu_custom_call.1} parent=1 // pred_fallthru
      _
    // Predicated region
    $region26: #{tpu_custom_call.1} parent=1 // pred_check
      _
    $region27: #{tpu_custom_call.1} parent=1 // pred_check_branch
      %121 = sbr.rel (0) target = $region29
    $region28: #{tpu_custom_call.1} parent=1 // pred_region
      %122 = dma.done [#allocation4], 16
    $region29: #{tpu_custom_call.1} parent=1 // pred_fallthru
      _
    %123 = vsyncpa [#allocation3], 1
    %124 = vsyncpa [#allocation6], 1
    %125 = vsyncpa [#allocation4], 1

</llo_original>
